<compile_context>
chip_gen: v5e
topology: v5e:2x2
jax: 0.10.0
libtpu: 0.0.40
codegen_flags: <defaults>
</compile_context>

<pallas_src>
import functools
import math

import jax
import jax.numpy as jnp
import numpy as np
from jax.experimental import pallas as pl
from jax.experimental.pallas import tpu as pltpu

LN_EPS = 1e-5
NEG_BIG = -1e30  # large finite negative for the causal mask (avoids -inf NaNs)


def _layer_norm(x, gamma, beta):
    mu = jnp.mean(x, axis=-1, keepdims=True)
    var = jnp.mean((x - mu) ** 2, axis=-1, keepdims=True)
    return (x - mu) * jax.lax.rsqrt(var + LN_EPS) * gamma + beta


def _block_kernel(n_heads, head_size, approx_recip,
                  x_ref,
                  ln1_g_ref, ln1_b_ref,
                  wqkv_ref, wproj_ref, bproj_ref,
                  ln2_g_ref, ln2_b_ref,
                  w1_ref, b1_ref, w2_ref, b2_ref,
                  o_ref,
                  att_ref):
    f32 = jnp.float32
    hs = head_size
    wdt = wqkv_ref.dtype                     # matmul operand dtype (f32 or bf16)

    x = x_ref[...].astype(f32)               # (T, C): one batch element per step
    T, C = x.shape

    # ---------------- LayerNorm 1 (f32) ----------------
    xn = _layer_norm(x, ln1_g_ref[...].astype(f32), ln1_b_ref[...].astype(f32))

    # Fused QKV projection: ONE (T, C) @ (C, 3C) matmul.
    qkv = jnp.dot(xn.astype(wdt), wqkv_ref[...], preferred_element_type=f32)
    # In-kernel q scaling: a single VPU multiply hidden under MXU slack.
    q = qkv[:, 0 * C:1 * C] * (1.0 / math.sqrt(hs))
    k = qkv[:, 1 * C:2 * C]
    v = qkv[:, 2 * C:3 * C]

    # Causal mask (strict upper triangle), built exactly once.
    row = jax.lax.broadcasted_iota(jnp.int32, (T, T), 0)
    col = jax.lax.broadcasted_iota(jnp.int32, (T, T), 1)
    causal = col > row

    # q @ k^T via dot_general contracting the last dims -> no materialized k.T.
    # TODO(synk): verify in the MLIR/bundle dump that this emits no per-head
    #             vxpose of k at realistic head counts; if it does, lay k out
    #             transposed once before the head loop.
    dnums = (((1,), (1,)), ((), ()))

    # Small static head loop (B is handled by the parallel grid axis).  Each
    # head's (T, hs) output is stored straight into a (T, C) VMEM scratch at
    # lane offset h*hs (cheap masked lane store) — no lane-axis concatenate,
    # no per-head K=hs projection matmul, and each head's intermediates die at
    # the scratch store.
    # TODO(synk): for realistic T, replace with a flash-style KV loop (online
    #             softmax + causal block skipping).
    for h in range(n_heads):
        sl = slice(h * hs, (h + 1) * hs)
        s = jax.lax.dot_general(q[:, sl], k[:, sl], dnums,
                                preferred_element_type=f32)           # (T, T)
        s = jnp.where(causal, NEG_BIG, s)
        m = jnp.max(s, axis=-1, keepdims=True)
        e = jnp.exp(s - m)
        denom = jnp.sum(e, axis=-1, keepdims=True)
        pv = jnp.dot(e.astype(wdt), v[:, sl].astype(wdt),
                     preferred_element_type=f32)                      # (T, hs)
        if approx_recip:
            inv = pl.reciprocal(denom, approx=True)   # EUP slot (bf16 path)
        else:
            inv = 1.0 / denom                         # exact f32 path
        att_ref[:, sl] = pv * inv

    # Single (T, C) @ (C, C) output projection (K = C: good MXU fill).
    att = att_ref[...]
    proj = jnp.dot(att.astype(wdt), wproj_ref[...],
                   preferred_element_type=f32) + bproj_ref[...].astype(f32)
    x1 = x + proj                                                     # residual 1

    # ---------------- LayerNorm 2 + FeedForward ----------------
    # TODO(synk): tile the 4C hidden dim (f32 accumulator) for GPT-size C under
    #             v7x's 64 MiB VMEM.
    x1n = _layer_norm(x1, ln2_g_ref[...].astype(f32), ln2_b_ref[...].astype(f32))
    h1 = jnp.dot(x1n.astype(wdt), w1_ref[...],
                 preferred_element_type=f32) + b1_ref[...].astype(f32)
    h1 = jnp.maximum(h1, 0.0)                                         # ReLU
    ff = jnp.dot(h1.astype(wdt), w2_ref[...],
                 preferred_element_type=f32) + b2_ref[...].astype(f32)

    o_ref[...] = (x1 + ff).astype(o_ref.dtype)                        # residual 2


def block_forward(x, params, n_heads, compute_dtype=None, donate_input=False):
    """Forward pass of Block.

    compute_dtype=jnp.bfloat16 casts only the matmul-operand weights (and the
    in-kernel matmul activations) to bf16 — valid on v5e/v6e/v7x, all of which
    have bf16-native MXUs — while x, the residual stream, LN params, biases,
    softmax and all matmul accumulations stay f32.

    donate_input=True aliases the input slab onto the output
    (input_output_aliases={0: 0}); only enable it when the caller donates x
    (e.g. under jit with donate_argnums), otherwise leave False.
    """
    B, T, C = x.shape
    assert C % n_heads == 0
    hs = C // n_heads

    wdt = x.dtype if compute_dtype is None else compute_dtype
    weights = (
        params["ln1_g"], params["ln1_b"],
        params["wqkv"].astype(wdt),
        params["wproj"].astype(wdt), params["bproj"],
        params["ln2_g"], params["ln2_b"],
        params["w1"].astype(wdt), params["b1"],
        params["w2"].astype(wdt), params["b2"],
    )

    # Rows = B*T; each grid step owns one batch element's T rows.
    x2 = x.reshape(B * T, C)

    kernel = functools.partial(_block_kernel, n_heads, hs,
                               compute_dtype is not None)

    grid_spec = pltpu.PrefetchScalarGridSpec(
        num_scalar_prefetch=0,
        grid=(B,),
        in_specs=[pl.BlockSpec((T, C), lambda b: (b, 0))] +
                 [pl.BlockSpec(w.shape, lambda b: (0, 0)) for w in weights],
        out_specs=pl.BlockSpec((T, C), lambda b: (b, 0)),
        scratch_shapes=[pltpu.VMEM((T, C), jnp.float32)],   # per-head concat slab
    )

    out = pl.pallas_call(
        kernel,
        out_shape=jax.ShapeDtypeStruct((B * T, C), x.dtype),
        grid_spec=grid_spec,
        compiler_params=pltpu.CompilerParams(
            dimension_semantics=("parallel",)),              # megacore on v7x
        input_output_aliases=({0: 0} if donate_input else {}),
    )(x2, *weights)
    return out.reshape(B, T, C)


def ref_block(x, p, n_heads):
    B, T, C = x.shape
    hs = C // n_heads

    def ln(v, g, b):
        mu = v.mean(-1, keepdims=True)
        var = ((v - mu) ** 2).mean(-1, keepdims=True)
        return (v - mu) / jnp.sqrt(var + LN_EPS) * g + b

    xn = ln(x, p["ln1_g"], p["ln1_b"])
    qkv = xn @ p["wqkv"]
    q, k, v = jnp.split(qkv, 3, axis=-1)
    q = q.reshape(B, T, n_heads, hs).transpose(0, 2, 1, 3)
    k = k.reshape(B, T, n_heads, hs).transpose(0, 2, 1, 3)
    v = v.reshape(B, T, n_heads, hs).transpose(0, 2, 1, 3)
    wei = q @ jnp.swapaxes(k, -1, -2)
    mask = jnp.triu(jnp.ones((T, T), dtype=bool), k=1)
    wei = jnp.where(mask, -jnp.inf, wei)
    wei = jax.nn.softmax(wei / math.sqrt(hs), axis=-1)
    out = (wei @ v).transpose(0, 2, 1, 3).reshape(B, T, C)
    att = out @ p["wproj"] + p["bproj"]
    x1 = x + att
    x1n = ln(x1, p["ln2_g"], p["ln2_b"])
    ff = jnp.maximum(x1n @ p["w1"] + p["b1"], 0.0) @ p["w2"] + p["b2"]
    return x1 + ff


if __name__ == "__main__":
    B, T, C, H = 2, 8, 32, 4          # batch, seq, embed_dim, n_heads

    key = jax.random.PRNGKey(0)
    ks = jax.random.split(key, 8)

    def uinit(k, shape, fan_in):
        bound = 1.0 / math.sqrt(fan_in)
        return jax.random.uniform(k, shape, jnp.float32, -bound, bound)

    params = {
        # LayerNorm params (PyTorch default init: gamma=1, beta=0), kept 2D (1, C)
        "ln1_g": jnp.ones((1, C), jnp.float32),
        "ln1_b": jnp.zeros((1, C), jnp.float32),
        "ln2_g": jnp.ones((1, C), jnp.float32),
        "ln2_b": jnp.zeros((1, C), jnp.float32),
        # Attention: qkv (no bias), proj (with bias) — stored (in, out)
        "wqkv": uinit(ks[0], (C, 3 * C), C),
        "wproj": uinit(ks[1], (C, C), C),
        "bproj": uinit(ks[2], (1, C), C),
        # FeedForward
        "w1": uinit(ks[3], (C, 4 * C), C),
        "b1": uinit(ks[4], (1, 4 * C), C),
        "w2": uinit(ks[5], (4 * C, C), 4 * C),
        "b2": uinit(ks[6], (1, C), 4 * C),
    }

    x = jax.random.normal(ks[7], (B, T, C), jnp.float32)

    ref = np.asarray(ref_block(x, params, H))

    # f32 path: exact softmax normalization in-kernel; the tolerance margin is
    # dominated by the TPU's default matmul precision in the XLA reference,
    # not by the kernel.
    out = jax.block_until_ready(block_forward(x, params, H))
    np.testing.assert_allclose(np.asarray(out), ref, rtol=2e-2, atol=2e-2)

    # bf16 operand path (v5e/v6e/v7x): x / residual / output stay f32, only
    # matmul operands are bf16; loose tolerance for bf16 operand rounding.
    out_bf16 = jax.block_until_ready(
        block_forward(x, params, H, compute_dtype=jnp.bfloat16))
    np.testing.assert_allclose(np.asarray(out_bf16), ref, rtol=1e-1, atol=1e-1)

    print("KERNEL_OK")
</pallas_src>

<mosaic_0001>
module attributes {stable_mosaic.version = 11 : i64} {
  func.func @_block_kernel(%arg0: i32, %arg1: memref<8x32xf32, #tpu.memory_space<vmem>>, %arg2: memref<1x32xf32, #tpu.memory_space<vmem>>, %arg3: memref<1x32xf32, #tpu.memory_space<vmem>>, %arg4: memref<32x96xf32, #tpu.memory_space<vmem>>, %arg5: memref<32x32xf32, #tpu.memory_space<vmem>>, %arg6: memref<1x32xf32, #tpu.memory_space<vmem>>, %arg7: memref<1x32xf32, #tpu.memory_space<vmem>>, %arg8: memref<1x32xf32, #tpu.memory_space<vmem>>, %arg9: memref<32x128xf32, #tpu.memory_space<vmem>>, %arg10: memref<1x128xf32, #tpu.memory_space<vmem>>, %arg11: memref<128x32xf32, #tpu.memory_space<vmem>>, %arg12: memref<1x32xf32, #tpu.memory_space<vmem>>, %arg13: memref<8x32xf32, #tpu.memory_space<vmem>>, %arg14: memref<8x32xf32, #tpu.memory_space<vmem>>) attributes {dimension_semantics = [#tpu.dimension_semantics<parallel>], iteration_bounds = array<i64: 2>, scalar_prefetch = 0 : i64, scratch_operands = 1 : i64, tpu.core_type = #tpu.core_type<tc>, window_params = [{transform_indices = @transform_0, window_bounds = array<i64: 8, 32>}, {pipeline_mode = #tpu.pipeline_mode<synchronous>, transform_indices = @transform_1, window_bounds = array<i64: 1, 32>}, {pipeline_mode = #tpu.pipeline_mode<synchronous>, transform_indices = @transform_2, window_bounds = array<i64: 1, 32>}, {pipeline_mode = #tpu.pipeline_mode<synchronous>, transform_indices = @transform_3, window_bounds = array<i64: 32, 96>}, {pipeline_mode = #tpu.pipeline_mode<synchronous>, transform_indices = @transform_4, window_bounds = array<i64: 32, 32>}, {pipeline_mode = #tpu.pipeline_mode<synchronous>, transform_indices = @transform_5, window_bounds = array<i64: 1, 32>}, {pipeline_mode = #tpu.pipeline_mode<synchronous>, transform_indices = @transform_6, window_bounds = array<i64: 1, 32>}, {pipeline_mode = #tpu.pipeline_mode<synchronous>, transform_indices = @transform_7, window_bounds = array<i64: 1, 32>}, {pipeline_mode = #tpu.pipeline_mode<synchronous>, transform_indices = @transform_8, window_bounds = array<i64: 32, 128>}, {pipeline_mode = #tpu.pipeline_mode<synchronous>, transform_indices = @transform_9, window_bounds = array<i64: 1, 128>}, {pipeline_mode = #tpu.pipeline_mode<synchronous>, transform_indices = @transform_10, window_bounds = array<i64: 128, 32>}, {pipeline_mode = #tpu.pipeline_mode<synchronous>, transform_indices = @transform_11, window_bounds = array<i64: 1, 32>}, {transform_indices = @transform_12, window_bounds = array<i64: 8, 32>}]} {
    %c0 = arith.constant 0 : index
    %c0_0 = arith.constant 0 : index
    %0 = vector.load %arg1[%c0, %c0_0] : memref<8x32xf32, #tpu.memory_space<vmem>>, vector<8x32xf32>
    %c0_1 = arith.constant 0 : index
    %c0_2 = arith.constant 0 : index
    %1 = vector.load %arg2[%c0_1, %c0_2] : memref<1x32xf32, #tpu.memory_space<vmem>>, vector<1x32xf32>
    %c0_3 = arith.constant 0 : index
    %c0_4 = arith.constant 0 : index
    %2 = vector.load %arg3[%c0_3, %c0_4] : memref<1x32xf32, #tpu.memory_space<vmem>>, vector<1x32xf32>
    %cst = arith.constant dense<0.000000e+00> : vector<8xf32>
    %3 = vector.multi_reduction <add>, %0, %cst [1] : vector<8x32xf32> to vector<8xf32>
    %4 = vector.shape_cast %3 : vector<8xf32> to vector<8x1xf32>
    %cst_5 = arith.constant 3.200000e+01 : f32
    %5 = vector.broadcast %cst_5 : f32 to vector<8x1xf32>
    %6 = arith.divf %4, %5 : vector<8x1xf32>
    %7 = vector.broadcast %6 : vector<8x1xf32> to vector<8x32xf32>
    %8 = arith.subf %0, %7 : vector<8x32xf32>
    %9 = arith.mulf %8, %8 : vector<8x32xf32>
    %cst_6 = arith.constant dense<0.000000e+00> : vector<8xf32>
    %10 = vector.multi_reduction <add>, %9, %cst_6 [1] : vector<8x32xf32> to vector<8xf32>
    %11 = vector.shape_cast %10 : vector<8xf32> to vector<8x1xf32>
    %cst_7 = arith.constant 3.200000e+01 : f32
    %12 = vector.broadcast %cst_7 : f32 to vector<8x1xf32>
    %13 = arith.divf %11, %12 : vector<8x1xf32>
    %14 = vector.broadcast %6 : vector<8x1xf32> to vector<8x32xf32>
    %15 = arith.subf %0, %14 : vector<8x32xf32>
    %cst_8 = arith.constant 9.99999974E-6 : f32
    %16 = vector.broadcast %cst_8 : f32 to vector<8x1xf32>
    %17 = arith.addf %13, %16 : vector<8x1xf32>
    %18 = math.rsqrt %17 : vector<8x1xf32>
    %19 = vector.broadcast %18 : vector<8x1xf32> to vector<8x32xf32>
    %20 = arith.mulf %15, %19 : vector<8x32xf32>
    %21 = vector.broadcast %1 : vector<1x32xf32> to vector<8x32xf32>
    %22 = arith.mulf %20, %21 : vector<8x32xf32>
    %23 = vector.broadcast %2 : vector<1x32xf32> to vector<8x32xf32>
    %24 = arith.addf %22, %23 : vector<8x32xf32>
    %c0_9 = arith.constant 0 : index
    %c0_10 = arith.constant 0 : index
    %25 = vector.load %arg4[%c0_9, %c0_10] : memref<32x96xf32, #tpu.memory_space<vmem>>, vector<32x96xf32>
    %cst_11 = arith.constant dense<0.000000e+00> : vector<8x96xf32>
    %26 = tpu.matmul %24, %25, %cst_11 {dimension_numbers = #tpu.dot_dimension_numbers<[1], [0], [0], [1], [0, 0, 1, 1], [], []>} : vector<8x32xf32>, vector<32x96xf32>, vector<8x96xf32> -> vector<8x96xf32>
    %27 = vector.extract_strided_slice %26 {offsets = [0, 0], sizes = [8, 32], strides = [1, 1]} : vector<8x96xf32> to vector<8x32xf32>
    %cst_12 = arith.constant 0.353553385 : f32
    %28 = vector.broadcast %cst_12 : f32 to vector<8x32xf32>
    %29 = arith.mulf %27, %28 : vector<8x32xf32>
    %30 = vector.extract_strided_slice %26 {offsets = [0, 32], sizes = [8, 32], strides = [1, 1]} : vector<8x96xf32> to vector<8x32xf32>
    %31 = vector.extract_strided_slice %26 {offsets = [0, 64], sizes = [8, 32], strides = [1, 1]} : vector<8x96xf32> to vector<8x32xf32>
    %32 = tpu.iota {dimensions = array<i32: 0>} : vector<8x8xi32>
    %33 = tpu.iota {dimensions = array<i32: 1>} : vector<8x8xi32>
    %34 = arith.cmpi sgt, %33, %32 : vector<8x8xi32>
    %35 = vector.extract_strided_slice %29 {offsets = [0, 0], sizes = [8, 8], strides = [1, 1]} : vector<8x32xf32> to vector<8x8xf32>
    %36 = vector.extract_strided_slice %30 {offsets = [0, 0], sizes = [8, 8], strides = [1, 1]} : vector<8x32xf32> to vector<8x8xf32>
    %cst_13 = arith.constant dense<0.000000e+00> : vector<8x8xf32>
    %37 = tpu.matmul %35, %36, %cst_13 {dimension_numbers = #tpu.dot_dimension_numbers<[1], [1], [0], [0], [0, 0, 1, 0], [], []>} : vector<8x8xf32>, vector<8x8xf32>, vector<8x8xf32> -> vector<8x8xf32>
    %cst_14 = arith.constant -1.000000e+30 : f32
    %38 = vector.broadcast %cst_14 : f32 to vector<8x8xf32>
    %39 = arith.select %34, %38, %37 : vector<8x8xi1>, vector<8x8xf32>
    %cst_15 = arith.constant dense<0xFF800000> : vector<8xf32>
    %40 = vector.multi_reduction <maximumf>, %39, %cst_15 [1] : vector<8x8xf32> to vector<8xf32>
    %41 = vector.shape_cast %40 : vector<8xf32> to vector<8x1xf32>
    %42 = vector.broadcast %41 : vector<8x1xf32> to vector<8x8xf32>
    %43 = arith.subf %39, %42 : vector<8x8xf32>
    %44 = math.exp %43 : vector<8x8xf32>
    %cst_16 = arith.constant dense<0.000000e+00> : vector<8xf32>
    %45 = vector.multi_reduction <add>, %44, %cst_16 [1] : vector<8x8xf32> to vector<8xf32>
    %46 = vector.shape_cast %45 : vector<8xf32> to vector<8x1xf32>
    %47 = vector.extract_strided_slice %31 {offsets = [0, 0], sizes = [8, 8], strides = [1, 1]} : vector<8x32xf32> to vector<8x8xf32>
    %cst_17 = arith.constant dense<0.000000e+00> : vector<8x8xf32>
    %48 = tpu.matmul %44, %47, %cst_17 {dimension_numbers = #tpu.dot_dimension_numbers<[1], [0], [0], [1], [0, 0, 1, 1], [], []>} : vector<8x8xf32>, vector<8x8xf32>, vector<8x8xf32> -> vector<8x8xf32>
    %cst_18 = arith.constant 1.000000e+00 : f32
    %49 = vector.broadcast %cst_18 : f32 to vector<8x1xf32>
    %50 = arith.divf %49, %46 : vector<8x1xf32>
    %51 = vector.broadcast %50 : vector<8x1xf32> to vector<8x8xf32>
    %52 = arith.mulf %48, %51 : vector<8x8xf32>
    %c0_19 = arith.constant 0 : index
    %c0_20 = arith.constant 0 : index
    %53 = vector.load %arg14[%c0_19, %c0_20] : memref<8x32xf32, #tpu.memory_space<vmem>>, vector<8x8xf32>
    tpu.vector_store %arg14[%c0_19, %c0_20], %52 {strides = array<i32>} : memref<8x32xf32, #tpu.memory_space<vmem>>, vector<8x8xf32>,
    %54 = vector.extract_strided_slice %29 {offsets = [0, 8], sizes = [8, 8], strides = [1, 1]} : vector<8x32xf32> to vector<8x8xf32>
    %55 = vector.extract_strided_slice %30 {offsets = [0, 8], sizes = [8, 8], strides = [1, 1]} : vector<8x32xf32> to vector<8x8xf32>
    %cst_21 = arith.constant dense<0.000000e+00> : vector<8x8xf32>
    %56 = tpu.matmul %54, %55, %cst_21 {dimension_numbers = #tpu.dot_dimension_numbers<[1], [1], [0], [0], [0, 0, 1, 0], [], []>} : vector<8x8xf32>, vector<8x8xf32>, vector<8x8xf32> -> vector<8x8xf32>
    %cst_22 = arith.constant -1.000000e+30 : f32
    %57 = vector.broadcast %cst_22 : f32 to vector<8x8xf32>
    %58 = arith.select %34, %57, %56 : vector<8x8xi1>, vector<8x8xf32>
    %cst_23 = arith.constant dense<0xFF800000> : vector<8xf32>
    %59 = vector.multi_reduction <maximumf>, %58, %cst_23 [1] : vector<8x8xf32> to vector<8xf32>
    %60 = vector.shape_cast %59 : vector<8xf32> to vector<8x1xf32>
    %61 = vector.broadcast %60 : vector<8x1xf32> to vector<8x8xf32>
    %62 = arith.subf %58, %61 : vector<8x8xf32>
    %63 = math.exp %62 : vector<8x8xf32>
    %cst_24 = arith.constant dense<0.000000e+00> : vector<8xf32>
    %64 = vector.multi_reduction <add>, %63, %cst_24 [1] : vector<8x8xf32> to vector<8xf32>
    %65 = vector.shape_cast %64 : vector<8xf32> to vector<8x1xf32>
    %66 = vector.extract_strided_slice %31 {offsets = [0, 8], sizes = [8, 8], strides = [1, 1]} : vector<8x32xf32> to vector<8x8xf32>
    %cst_25 = arith.constant dense<0.000000e+00> : vector<8x8xf32>
    %67 = tpu.matmul %63, %66, %cst_25 {dimension_numbers = #tpu.dot_dimension_numbers<[1], [0], [0], [1], [0, 0, 1, 1], [], []>} : vector<8x8xf32>, vector<8x8xf32>, vector<8x8xf32> -> vector<8x8xf32>
    %cst_26 = arith.constant 1.000000e+00 : f32
    %68 = vector.broadcast %cst_26 : f32 to vector<8x1xf32>
    %69 = arith.divf %68, %65 : vector<8x1xf32>
    %70 = vector.broadcast %69 : vector<8x1xf32> to vector<8x8xf32>
    %71 = arith.mulf %67, %70 : vector<8x8xf32>
    %c0_27 = arith.constant 0 : index
    %c8 = arith.constant 8 : index
    %72 = vector.load %arg14[%c0_27, %c8] : memref<8x32xf32, #tpu.memory_space<vmem>>, vector<8x8xf32>
    tpu.vector_store %arg14[%c0_27, %c8], %71 {strides = array<i32>} : memref<8x32xf32, #tpu.memory_space<vmem>>, vector<8x8xf32>,
    %73 = vector.extract_strided_slice %29 {offsets = [0, 16], sizes = [8, 8], strides = [1, 1]} : vector<8x32xf32> to vector<8x8xf32>
    %74 = vector.extract_strided_slice %30 {offsets = [0, 16], sizes = [8, 8], strides = [1, 1]} : vector<8x32xf32> to vector<8x8xf32>
    %cst_28 = arith.constant dense<0.000000e+00> : vector<8x8xf32>
    %75 = tpu.matmul %73, %74, %cst_28 {dimension_numbers = #tpu.dot_dimension_numbers<[1], [1], [0], [0], [0, 0, 1, 0], [], []>} : vector<8x8xf32>, vector<8x8xf32>, vector<8x8xf32> -> vector<8x8xf32>
    %cst_29 = arith.constant -1.000000e+30 : f32
    %76 = vector.broadcast %cst_29 : f32 to vector<8x8xf32>
    %77 = arith.select %34, %76, %75 : vector<8x8xi1>, vector<8x8xf32>
    %cst_30 = arith.constant dense<0xFF800000> : vector<8xf32>
    %78 = vector.multi_reduction <maximumf>, %77, %cst_30 [1] : vector<8x8xf32> to vector<8xf32>
    %79 = vector.shape_cast %78 : vector<8xf32> to vector<8x1xf32>
    %80 = vector.broadcast %79 : vector<8x1xf32> to vector<8x8xf32>
    %81 = arith.subf %77, %80 : vector<8x8xf32>
    %82 = math.exp %81 : vector<8x8xf32>
    %cst_31 = arith.constant dense<0.000000e+00> : vector<8xf32>
    %83 = vector.multi_reduction <add>, %82, %cst_31 [1] : vector<8x8xf32> to vector<8xf32>
    %84 = vector.shape_cast %83 : vector<8xf32> to vector<8x1xf32>
    %85 = vector.extract_strided_slice %31 {offsets = [0, 16], sizes = [8, 8], strides = [1, 1]} : vector<8x32xf32> to vector<8x8xf32>
    %cst_32 = arith.constant dense<0.000000e+00> : vector<8x8xf32>
    %86 = tpu.matmul %82, %85, %cst_32 {dimension_numbers = #tpu.dot_dimension_numbers<[1], [0], [0], [1], [0, 0, 1, 1], [], []>} : vector<8x8xf32>, vector<8x8xf32>, vector<8x8xf32> -> vector<8x8xf32>
    %cst_33 = arith.constant 1.000000e+00 : f32
    %87 = vector.broadcast %cst_33 : f32 to vector<8x1xf32>
    %88 = arith.divf %87, %84 : vector<8x1xf32>
    %89 = vector.broadcast %88 : vector<8x1xf32> to vector<8x8xf32>
    %90 = arith.mulf %86, %89 : vector<8x8xf32>
    %c0_34 = arith.constant 0 : index
    %c16 = arith.constant 16 : index
    %91 = vector.load %arg14[%c0_34, %c16] : memref<8x32xf32, #tpu.memory_space<vmem>>, vector<8x8xf32>
    tpu.vector_store %arg14[%c0_34, %c16], %90 {strides = array<i32>} : memref<8x32xf32, #tpu.memory_space<vmem>>, vector<8x8xf32>,
    %92 = vector.extract_strided_slice %29 {offsets = [0, 24], sizes = [8, 8], strides = [1, 1]} : vector<8x32xf32> to vector<8x8xf32>
    %93 = vector.extract_strided_slice %30 {offsets = [0, 24], sizes = [8, 8], strides = [1, 1]} : vector<8x32xf32> to vector<8x8xf32>
    %cst_35 = arith.constant dense<0.000000e+00> : vector<8x8xf32>
    %94 = tpu.matmul %92, %93, %cst_35 {dimension_numbers = #tpu.dot_dimension_numbers<[1], [1], [0], [0], [0, 0, 1, 0], [], []>} : vector<8x8xf32>, vector<8x8xf32>, vector<8x8xf32> -> vector<8x8xf32>
    %cst_36 = arith.constant -1.000000e+30 : f32
    %95 = vector.broadcast %cst_36 : f32 to vector<8x8xf32>
    %96 = arith.select %34, %95, %94 : vector<8x8xi1>, vector<8x8xf32>
    %cst_37 = arith.constant dense<0xFF800000> : vector<8xf32>
    %97 = vector.multi_reduction <maximumf>, %96, %cst_37 [1] : vector<8x8xf32> to vector<8xf32>
    %98 = vector.shape_cast %97 : vector<8xf32> to vector<8x1xf32>
    %99 = vector.broadcast %98 : vector<8x1xf32> to vector<8x8xf32>
    %100 = arith.subf %96, %99 : vector<8x8xf32>
    %101 = math.exp %100 : vector<8x8xf32>
    %cst_38 = arith.constant dense<0.000000e+00> : vector<8xf32>
    %102 = vector.multi_reduction <add>, %101, %cst_38 [1] : vector<8x8xf32> to vector<8xf32>
    %103 = vector.shape_cast %102 : vector<8xf32> to vector<8x1xf32>
    %104 = vector.extract_strided_slice %31 {offsets = [0, 24], sizes = [8, 8], strides = [1, 1]} : vector<8x32xf32> to vector<8x8xf32>
    %cst_39 = arith.constant dense<0.000000e+00> : vector<8x8xf32>
    %105 = tpu.matmul %101, %104, %cst_39 {dimension_numbers = #tpu.dot_dimension_numbers<[1], [0], [0], [1], [0, 0, 1, 1], [], []>} : vector<8x8xf32>, vector<8x8xf32>, vector<8x8xf32> -> vector<8x8xf32>
    %cst_40 = arith.constant 1.000000e+00 : f32
    %106 = vector.broadcast %cst_40 : f32 to vector<8x1xf32>
    %107 = arith.divf %106, %103 : vector<8x1xf32>
    %108 = vector.broadcast %107 : vector<8x1xf32> to vector<8x8xf32>
    %109 = arith.mulf %105, %108 : vector<8x8xf32>
    %c0_41 = arith.constant 0 : index
    %c24 = arith.constant 24 : index
    %110 = vector.load %arg14[%c0_41, %c24] : memref<8x32xf32, #tpu.memory_space<vmem>>, vector<8x8xf32>
    tpu.vector_store %arg14[%c0_41, %c24], %109 {strides = array<i32>} : memref<8x32xf32, #tpu.memory_space<vmem>>, vector<8x8xf32>,
    %c0_42 = arith.constant 0 : index
    %c0_43 = arith.constant 0 : index
    %111 = vector.load %arg14[%c0_42, %c0_43] : memref<8x32xf32, #tpu.memory_space<vmem>>, vector<8x32xf32>
    %c0_44 = arith.constant 0 : index
    %c0_45 = arith.constant 0 : index
    %112 = vector.load %arg5[%c0_44, %c0_45] : memref<32x32xf32, #tpu.memory_space<vmem>>, vector<32x32xf32>
    %cst_46 = arith.constant dense<0.000000e+00> : vector<8x32xf32>
    %113 = tpu.matmul %111, %112, %cst_46 {dimension_numbers = #tpu.dot_dimension_numbers<[1], [0], [0], [1], [0, 0, 1, 1], [], []>} : vector<8x32xf32>, vector<32x32xf32>, vector<8x32xf32> -> vector<8x32xf32>
    %c0_47 = arith.constant 0 : index
    %c0_48 = arith.constant 0 : index
    %114 = vector.load %arg6[%c0_47, %c0_48] : memref<1x32xf32, #tpu.memory_space<vmem>>, vector<1x32xf32>
    %115 = vector.broadcast %114 : vector<1x32xf32> to vector<8x32xf32>
    %116 = arith.addf %113, %115 : vector<8x32xf32>
    %117 = arith.addf %0, %116 : vector<8x32xf32>
    %c0_49 = arith.constant 0 : index
    %c0_50 = arith.constant 0 : index
    %118 = vector.load %arg7[%c0_49, %c0_50] : memref<1x32xf32, #tpu.memory_space<vmem>>, vector<1x32xf32>
    %c0_51 = arith.constant 0 : index
    %c0_52 = arith.constant 0 : index
    %119 = vector.load %arg8[%c0_51, %c0_52] : memref<1x32xf32, #tpu.memory_space<vmem>>, vector<1x32xf32>
    %cst_53 = arith.constant dense<0.000000e+00> : vector<8xf32>
    %120 = vector.multi_reduction <add>, %117, %cst_53 [1] : vector<8x32xf32> to vector<8xf32>
    %121 = vector.shape_cast %120 : vector<8xf32> to vector<8x1xf32>
    %cst_54 = arith.constant 3.200000e+01 : f32
    %122 = vector.broadcast %cst_54 : f32 to vector<8x1xf32>
    %123 = arith.divf %121, %122 : vector<8x1xf32>
    %124 = vector.broadcast %123 : vector<8x1xf32> to vector<8x32xf32>
    %125 = arith.subf %117, %124 : vector<8x32xf32>
    %126 = arith.mulf %125, %125 : vector<8x32xf32>
    %cst_55 = arith.constant dense<0.000000e+00> : vector<8xf32>
    %127 = vector.multi_reduction <add>, %126, %cst_55 [1] : vector<8x32xf32> to vector<8xf32>
    %128 = vector.shape_cast %127 : vector<8xf32> to vector<8x1xf32>
    %cst_56 = arith.constant 3.200000e+01 : f32
    %129 = vector.broadcast %cst_56 : f32 to vector<8x1xf32>
    %130 = arith.divf %128, %129 : vector<8x1xf32>
    %131 = vector.broadcast %123 : vector<8x1xf32> to vector<8x32xf32>
    %132 = arith.subf %117, %131 : vector<8x32xf32>
    %cst_57 = arith.constant 9.99999974E-6 : f32
    %133 = vector.broadcast %cst_57 : f32 to vector<8x1xf32>
    %134 = arith.addf %130, %133 : vector<8x1xf32>
    %135 = math.rsqrt %134 : vector<8x1xf32>
    %136 = vector.broadcast %135 : vector<8x1xf32> to vector<8x32xf32>
    %137 = arith.mulf %132, %136 : vector<8x32xf32>
    %138 = vector.broadcast %118 : vector<1x32xf32> to vector<8x32xf32>
    %139 = arith.mulf %137, %138 : vector<8x32xf32>
    %140 = vector.broadcast %119 : vector<1x32xf32> to vector<8x32xf32>
    %141 = arith.addf %139, %140 : vector<8x32xf32>
    %c0_58 = arith.constant 0 : index
    %c0_59 = arith.constant 0 : index
    %142 = vector.load %arg9[%c0_58, %c0_59] : memref<32x128xf32, #tpu.memory_space<vmem>>, vector<32x128xf32>
    %cst_60 = arith.constant dense<0.000000e+00> : vector<8x128xf32>
    %143 = tpu.matmul %141, %142, %cst_60 {dimension_numbers = #tpu.dot_dimension_numbers<[1], [0], [0], [1], [0, 0, 1, 1], [], []>} : vector<8x32xf32>, vector<32x128xf32>, vector<8x128xf32> -> vector<8x128xf32>
    %c0_61 = arith.constant 0 : index
    %c0_62 = arith.constant 0 : index
    %144 = vector.load %arg10[%c0_61, %c0_62] : memref<1x128xf32, #tpu.memory_space<vmem>>, vector<1x128xf32>
    %145 = vector.broadcast %144 : vector<1x128xf32> to vector<8x128xf32>
    %146 = arith.addf %143, %145 : vector<8x128xf32>
    %cst_63 = arith.constant 0.000000e+00 : f32
    %147 = vector.broadcast %cst_63 : f32 to vector<8x128xf32>
    %148 = arith.maximumf %146, %147 : vector<8x128xf32>
    %c0_64 = arith.constant 0 : index
    %c0_65 = arith.constant 0 : index
    %149 = vector.load %arg11[%c0_64, %c0_65] : memref<128x32xf32, #tpu.memory_space<vmem>>, vector<128x32xf32>
    %cst_66 = arith.constant dense<0.000000e+00> : vector<8x32xf32>
    %150 = tpu.matmul %148, %149, %cst_66 {dimension_numbers = #tpu.dot_dimension_numbers<[1], [0], [0], [1], [0, 0, 1, 1], [], []>} : vector<8x128xf32>, vector<128x32xf32>, vector<8x32xf32> -> vector<8x32xf32>
    %c0_67 = arith.constant 0 : index
    %c0_68 = arith.constant 0 : index
    %151 = vector.load %arg12[%c0_67, %c0_68] : memref<1x32xf32, #tpu.memory_space<vmem>>, vector<1x32xf32>
    %152 = vector.broadcast %151 : vector<1x32xf32> to vector<8x32xf32>
    %153 = arith.addf %150, %152 : vector<8x32xf32>
    %154 = arith.addf %117, %153 : vector<8x32xf32>
    %c0_69 = arith.constant 0 : index
    %c0_70 = arith.constant 0 : index
    %155 = vector.load %arg13[%c0_69, %c0_70] : memref<8x32xf32, #tpu.memory_space<vmem>>, vector<8x32xf32>
    tpu.vector_store %arg13[%c0_69, %c0_70], %154 {strides = array<i32>} : memref<8x32xf32, #tpu.memory_space<vmem>>, vector<8x32xf32>,
    return
  }
  func.func @transform_0(%arg0: i32) -> (i32, i32) {
    %c0_i32 = arith.constant 0 : i32
    %c0_i32_0 = arith.constant 0 : i32
    return %arg0, %c0_i32 : i32, i32
  }
  func.func @transform_1(%arg0: i32) -> (i32, i32) {
    %c0_i32 = arith.constant 0 : i32
    %c0_i32_0 = arith.constant 0 : i32
    %c0_i32_1 = arith.constant 0 : i32
    return %c0_i32, %c0_i32_0 : i32, i32
  }
  func.func @transform_2(%arg0: i32) -> (i32, i32) {
    %c0_i32 = arith.constant 0 : i32
    %c0_i32_0 = arith.constant 0 : i32
    %c0_i32_1 = arith.constant 0 : i32
    return %c0_i32, %c0_i32_0 : i32, i32
  }
  func.func @transform_3(%arg0: i32) -> (i32, i32) {
    %c0_i32 = arith.constant 0 : i32
    %c0_i32_0 = arith.constant 0 : i32
    %c0_i32_1 = arith.constant 0 : i32
    return %c0_i32, %c0_i32_0 : i32, i32
  }
  func.func @transform_4(%arg0: i32) -> (i32, i32) {
    %c0_i32 = arith.constant 0 : i32
    %c0_i32_0 = arith.constant 0 : i32
    %c0_i32_1 = arith.constant 0 : i32
    return %c0_i32, %c0_i32_0 : i32, i32
  }
  func.func @transform_5(%arg0: i32) -> (i32, i32) {
    %c0_i32 = arith.constant 0 : i32
    %c0_i32_0 = arith.constant 0 : i32
    %c0_i32_1 = arith.constant 0 : i32
    return %c0_i32, %c0_i32_0 : i32, i32
  }
  func.func @transform_6(%arg0: i32) -> (i32, i32) {
    %c0_i32 = arith.constant 0 : i32
    %c0_i32_0 = arith.constant 0 : i32
    %c0_i32_1 = arith.constant 0 : i32
    return %c0_i32, %c0_i32_0 : i32, i32
  }
  func.func @transform_7(%arg0: i32) -> (i32, i32) {
    %c0_i32 = arith.constant 0 : i32
    %c0_i32_0 = arith.constant 0 : i32
    %c0_i32_1 = arith.constant 0 : i32
    return %c0_i32, %c0_i32_0 : i32, i32
  }
  func.func @transform_8(%arg0: i32) -> (i32, i32) {
    %c0_i32 = arith.constant 0 : i32
    %c0_i32_0 = arith.constant 0 : i32
    %c0_i32_1 = arith.constant 0 : i32
    return %c0_i32, %c0_i32_0 : i32, i32
  }
  func.func @transform_9(%arg0: i32) -> (i32, i32) {
    %c0_i32 = arith.constant 0 : i32
    %c0_i32_0 = arith.constant 0 : i32
    %c0_i32_1 = arith.constant 0 : i32
    return %c0_i32, %c0_i32_0 : i32, i32
  }
  func.func @transform_10(%arg0: i32) -> (i32, i32) {
    %c0_i32 = arith.constant 0 : i32
    %c0_i32_0 = arith.constant 0 : i32
    %c0_i32_1 = arith.constant 0 : i32
    return %c0_i32, %c0_i32_0 : i32, i32
  }
  func.func @transform_11(%arg0: i32) -> (i32, i32) {
    %c0_i32 = arith.constant 0 : i32
    %c0_i32_0 = arith.constant 0 : i32
    %c0_i32_1 = arith.constant 0 : i32
    return %c0_i32, %c0_i32_0 : i32, i32
  }
  func.func @transform_12(%arg0: i32) -> (i32, i32) {
    %c0_i32 = arith.constant 0 : i32
    %c0_i32_0 = arith.constant 0 : i32
    return %arg0, %c0_i32 : i32, i32
  }
}

</mosaic_0001>

<llo_original>
// kernel: tpu_custom_call.1
$region0: #{tpu_custom_call.1}
  #allocation0 [shape = 'u32[]', space=smem, size = 0x4, offset = 0x4, fixed_abs, tag = 'smem constant byte address 0x4 - core index']
  #allocation1 [shape = 'u32[72,128]{1,0:T(1,128)}', space=vmem, size = 0x9000, scoped, tag = 'internal scratch']
  #allocation2 [shape = 'f32[8,32]{1,0:T(8,128)}', space=vmem, size = 0x1000, scoped, tag = 'scratch operand']
  %s0 = inlined_call_operand.vmem [shape: f32[16,32], index: 0, kind: input, shape index: {}]
  %s1 = inlined_call_operand.vmem [shape: f32[1,32], index: 1, kind: input, shape index: {}]
  %s2 = inlined_call_operand.vmem [shape: f32[1,32], index: 2, kind: input, shape index: {}]
  %s3 = inlined_call_operand.vmem [shape: f32[32,96], index: 3, kind: input, shape index: {}]
  %s4 = inlined_call_operand.vmem [shape: f32[32,32], index: 4, kind: input, shape index: {}]
  %s5 = inlined_call_operand.vmem [shape: f32[1,32], index: 5, kind: input, shape index: {}]
  %s6 = inlined_call_operand.vmem [shape: f32[1,32], index: 6, kind: input, shape index: {}]
  %s7 = inlined_call_operand.vmem [shape: f32[1,32], index: 7, kind: input, shape index: {}]
  %s8 = inlined_call_operand.vmem [shape: f32[32,128], index: 8, kind: input, shape index: {}]
  %s9 = inlined_call_operand.vmem [shape: f32[1,128], index: 9, kind: input, shape index: {}]
  %s10 = inlined_call_operand.vmem [shape: f32[128,32], index: 10, kind: input, shape index: {}]
  %s11 = inlined_call_operand.vmem [shape: f32[1,32], index: 11, kind: input, shape index: {}]
  %s12 = inlined_call_operand.hbm [shape: f32[16,32], index: 12, kind: output, shape index: {}]
  %s13 = sld [smem:[#allocation0]]
  $region81: #{tpu_custom_call.1} parent=0
    _
  %s15 = ssub.s32 1, %s13
  %s16 = scalar_select 0, %s15, %s13
  $region1: #{tpu_custom_call.1} parent=0
    #allocation3 [shape = 'u8[8192]{0}', space=vmem, size = 0x2000, scoped, tag = 'output window, operand 0']
    #allocation4 [shape = 's32[2]{0}', space=sflag, size = 0x8, scoped, tag = 'scoped memory for tpu_custom_call.1']
    %17 = vsyncpa [#allocation4], 0
    %s18 = scalar_lea.sflag [#allocation4], 1
    %19 = vsyncpa %s18, 0
    loop: start=0, step=1, limit=4
    $region2: #{tpu_custom_call.1} parent=1 // loop_pre_header
      _
    $region3: #{tpu_custom_call.1} parent=1 // loop_header
      %s21 = sphi 0, %s25
      %p22 = scmp.ge.s32.totalorder %s21, 4
      %s31 = sphi 0, %s33
      %s34 = sphi 0, %s31
      %s35 = sphi 0, %s34
      %s51 = sphi 0, %s35
      %s55 = sphi 0, %s55
      %s57 = sphi 0, %s55
      %s58 = sphi 0, %s57
      %s72 = sphi 0, %s58
      %s76 = sphi 0, %s76
      %s78 = sphi 0, %s76
      %s79 = sphi 0, %s78
      %s93 = sphi 0, %s79
      %s97 = sphi 0, %s97
      %s99 = sphi 0, %s97
      %s100 = sphi 0, %s99
      %s114 = sphi 0, %s100
      %s118 = sphi 0, %s118
      %s120 = sphi 0, %s118
      %s121 = sphi 0, %s120
      %s135 = sphi 0, %s121
      %s139 = sphi 0, %s139
      %s141 = sphi 0, %s139
      %s142 = sphi 0, %s141
      %s156 = sphi 0, %s142
      %s160 = sphi 0, %s160
      %s162 = sphi 0, %s160
      %s163 = sphi 0, %s162
      %s177 = sphi 0, %s163
      %s181 = sphi 0, %s181
      %s183 = sphi 0, %s181
      %s184 = sphi 0, %s183
      %s198 = sphi 0, %s184
      %s202 = sphi 0, %s202
      %s204 = sphi 0, %s202
      %s205 = sphi 0, %s204
      %s219 = sphi 0, %s205
      %s223 = sphi 0, %s223
      %s225 = sphi 0, %s223
      %s226 = sphi 0, %s225
      %s240 = sphi 0, %s226
      %s244 = sphi 0, %s244
      %s246 = sphi 0, %s244
      %s247 = sphi 0, %s246
      %s261 = sphi 0, %s247
      %s265 = sphi 0, %s265
      %s267 = sphi 0, %s265
      %s268 = sphi 0, %s267
      %s282 = sphi 0, %s268
      %s288 = sphi 0, %s290
      %s291 = sphi 0, %s288
      %s292 = sphi 0, %s291
      %s308 = sphi 0, %s292
    $region4: #{tpu_custom_call.1} parent=1 // loop_header_branch
      %24 = sbr.rel (%p22) target = $region8
    $region5: #{tpu_custom_call.1} parent=1 // loop_body
      %s26 = ssub.s32 %s21, 1
      %s27 = ssub.s32 %s21, 2
      %s28 = sadd.s32 %s21, 1
      %s29 = ssub.s32 %s21, %s28
      %p30 = scmp.eq.s32.totalorder %s29, 0
      %s32 = sadd.s32 %s31, 1
      %s33 = scalar_select %p30, %s31, %s32
      %p36 = pneg %p30
      %p37 = scmp.eq.s32.totalorder %s21, 1
      %p38 = por %p36, %p37
      %p39 = scmp.ne.s32.totalorder %s31, %s34
      %p40 = scmp.eq.s32.totalorder %s21, 0
      %p41 = por %p39, %p40
      %p42 = scmp.ne.s32.totalorder %s31, %s34
      %p43 = scmp.eq.s32.totalorder %s26, 1
      %p44 = por %p42, %p43
      %p45 = scmp.ne.s32.totalorder %s34, %s35
      %p46 = scmp.eq.s32.totalorder %s26, 0
      %p47 = por %p45, %p46
      %p48 = scmp.ne.s32.totalorder %s34, %s35
      %p49 = scmp.eq.s32.totalorder %s27, 1
      %p50 = por %p48, %p49
      %p52 = scmp.ne.s32.totalorder %s35, %s51
      %p53 = scmp.eq.s32.totalorder %s27, 0
      %p54 = por %p52, %p53
      %s56 = sadd.s32 %s55, 1
      %p59 = scmp.eq.s32.totalorder %s21, 1
      %p60 = scmp.ne.s32.totalorder %s55, %s57
      %p61 = scmp.eq.s32.totalorder %s21, 0
      %p62 = por %p60, %p61
      %p63 = scmp.ne.s32.totalorder %s55, %s57
      %p64 = scmp.eq.s32.totalorder %s26, 1
      %p65 = por %p63, %p64
      %p66 = scmp.ne.s32.totalorder %s57, %s58
      %p67 = scmp.eq.s32.totalorder %s26, 0
      %p68 = por %p66, %p67
      %p69 = scmp.ne.s32.totalorder %s57, %s58
      %p70 = scmp.eq.s32.totalorder %s27, 1
      %p71 = por %p69, %p70
      %p73 = scmp.ne.s32.totalorder %s58, %s72
      %p74 = scmp.eq.s32.totalorder %s27, 0
      %p75 = por %p73, %p74
      %s77 = sadd.s32 %s76, 1
      %p80 = scmp.eq.s32.totalorder %s21, 1
      %p81 = scmp.ne.s32.totalorder %s76, %s78
      %p82 = scmp.eq.s32.totalorder %s21, 0
      %p83 = por %p81, %p82
      %p84 = scmp.ne.s32.totalorder %s76, %s78
      %p85 = scmp.eq.s32.totalorder %s26, 1
      %p86 = por %p84, %p85
      %p87 = scmp.ne.s32.totalorder %s78, %s79
      %p88 = scmp.eq.s32.totalorder %s26, 0
      %p89 = por %p87, %p88
      %p90 = scmp.ne.s32.totalorder %s78, %s79
      %p91 = scmp.eq.s32.totalorder %s27, 1
      %p92 = por %p90, %p91
      %p94 = scmp.ne.s32.totalorder %s79, %s93
      %p95 = scmp.eq.s32.totalorder %s27, 0
      %p96 = por %p94, %p95
      %s98 = sadd.s32 %s97, 1
      %p101 = scmp.eq.s32.totalorder %s21, 1
      %p102 = scmp.ne.s32.totalorder %s97, %s99
      %p103 = scmp.eq.s32.totalorder %s21, 0
      %p104 = por %p102, %p103
      %p105 = scmp.ne.s32.totalorder %s97, %s99
      %p106 = scmp.eq.s32.totalorder %s26, 1
      %p107 = por %p105, %p106
      %p108 = scmp.ne.s32.totalorder %s99, %s100
      %p109 = scmp.eq.s32.totalorder %s26, 0
      %p110 = por %p108, %p109
      %p111 = scmp.ne.s32.totalorder %s99, %s100
      %p112 = scmp.eq.s32.totalorder %s27, 1
      %p113 = por %p111, %p112
      %p115 = scmp.ne.s32.totalorder %s100, %s114
      %p116 = scmp.eq.s32.totalorder %s27, 0
      %p117 = por %p115, %p116
      %s119 = sadd.s32 %s118, 1
      %p122 = scmp.eq.s32.totalorder %s21, 1
      %p123 = scmp.ne.s32.totalorder %s118, %s120
      %p124 = scmp.eq.s32.totalorder %s21, 0
      %p125 = por %p123, %p124
      %p126 = scmp.ne.s32.totalorder %s118, %s120
      %p127 = scmp.eq.s32.totalorder %s26, 1
      %p128 = por %p126, %p127
      %p129 = scmp.ne.s32.totalorder %s120, %s121
      %p130 = scmp.eq.s32.totalorder %s26, 0
      %p131 = por %p129, %p130
      %p132 = scmp.ne.s32.totalorder %s120, %s121
      %p133 = scmp.eq.s32.totalorder %s27, 1
      %p134 = por %p132, %p133
      %p136 = scmp.ne.s32.totalorder %s121, %s135
      %p137 = scmp.eq.s32.totalorder %s27, 0
      %p138 = por %p136, %p137
      %s140 = sadd.s32 %s139, 1
      %p143 = scmp.eq.s32.totalorder %s21, 1
      %p144 = scmp.ne.s32.totalorder %s139, %s141
      %p145 = scmp.eq.s32.totalorder %s21, 0
      %p146 = por %p144, %p145
      %p147 = scmp.ne.s32.totalorder %s139, %s141
      %p148 = scmp.eq.s32.totalorder %s26, 1
      %p149 = por %p147, %p148
      %p150 = scmp.ne.s32.totalorder %s141, %s142
      %p151 = scmp.eq.s32.totalorder %s26, 0
      %p152 = por %p150, %p151
      %p153 = scmp.ne.s32.totalorder %s141, %s142
      %p154 = scmp.eq.s32.totalorder %s27, 1
      %p155 = por %p153, %p154
      %p157 = scmp.ne.s32.totalorder %s142, %s156
      %p158 = scmp.eq.s32.totalorder %s27, 0
      %p159 = por %p157, %p158
      %s161 = sadd.s32 %s160, 1
      %p164 = scmp.eq.s32.totalorder %s21, 1
      %p165 = scmp.ne.s32.totalorder %s160, %s162
      %p166 = scmp.eq.s32.totalorder %s21, 0
      %p167 = por %p165, %p166
      %p168 = scmp.ne.s32.totalorder %s160, %s162
      %p169 = scmp.eq.s32.totalorder %s26, 1
      %p170 = por %p168, %p169
      %p171 = scmp.ne.s32.totalorder %s162, %s163
      %p172 = scmp.eq.s32.totalorder %s26, 0
      %p173 = por %p171, %p172
      %p174 = scmp.ne.s32.totalorder %s162, %s163
      %p175 = scmp.eq.s32.totalorder %s27, 1
      %p176 = por %p174, %p175
      %p178 = scmp.ne.s32.totalorder %s163, %s177
      %p179 = scmp.eq.s32.totalorder %s27, 0
      %p180 = por %p178, %p179
      %s182 = sadd.s32 %s181, 1
      %p185 = scmp.eq.s32.totalorder %s21, 1
      %p186 = scmp.ne.s32.totalorder %s181, %s183
      %p187 = scmp.eq.s32.totalorder %s21, 0
      %p188 = por %p186, %p187
      %p189 = scmp.ne.s32.totalorder %s181, %s183
      %p190 = scmp.eq.s32.totalorder %s26, 1
      %p191 = por %p189, %p190
      %p192 = scmp.ne.s32.totalorder %s183, %s184
      %p193 = scmp.eq.s32.totalorder %s26, 0
      %p194 = por %p192, %p193
      %p195 = scmp.ne.s32.totalorder %s183, %s184
      %p196 = scmp.eq.s32.totalorder %s27, 1
      %p197 = por %p195, %p196
      %p199 = scmp.ne.s32.totalorder %s184, %s198
      %p200 = scmp.eq.s32.totalorder %s27, 0
      %p201 = por %p199, %p200
      %s203 = sadd.s32 %s202, 1
      %p206 = scmp.eq.s32.totalorder %s21, 1
      %p207 = scmp.ne.s32.totalorder %s202, %s204
      %p208 = scmp.eq.s32.totalorder %s21, 0
      %p209 = por %p207, %p208
      %p210 = scmp.ne.s32.totalorder %s202, %s204
      %p211 = scmp.eq.s32.totalorder %s26, 1
      %p212 = por %p210, %p211
      %p213 = scmp.ne.s32.totalorder %s204, %s205
      %p214 = scmp.eq.s32.totalorder %s26, 0
      %p215 = por %p213, %p214
      %p216 = scmp.ne.s32.totalorder %s204, %s205
      %p217 = scmp.eq.s32.totalorder %s27, 1
      %p218 = por %p216, %p217
      %p220 = scmp.ne.s32.totalorder %s205, %s219
      %p221 = scmp.eq.s32.totalorder %s27, 0
      %p222 = por %p220, %p221
      %s224 = sadd.s32 %s223, 1
      %p227 = scmp.eq.s32.totalorder %s21, 1
      %p228 = scmp.ne.s32.totalorder %s223, %s225
      %p229 = scmp.eq.s32.totalorder %s21, 0
      %p230 = por %p228, %p229
      %p231 = scmp.ne.s32.totalorder %s223, %s225
      %p232 = scmp.eq.s32.totalorder %s26, 1
      %p233 = por %p231, %p232
      %p234 = scmp.ne.s32.totalorder %s225, %s226
      %p235 = scmp.eq.s32.totalorder %s26, 0
      %p236 = por %p234, %p235
      %p237 = scmp.ne.s32.totalorder %s225, %s226
      %p238 = scmp.eq.s32.totalorder %s27, 1
      %p239 = por %p237, %p238
      %p241 = scmp.ne.s32.totalorder %s226, %s240
      %p242 = scmp.eq.s32.totalorder %s27, 0
      %p243 = por %p241, %p242
      %s245 = sadd.s32 %s244, 1
      %p248 = scmp.eq.s32.totalorder %s21, 1
      %p249 = scmp.ne.s32.totalorder %s244, %s246
      %p250 = scmp.eq.s32.totalorder %s21, 0
      %p251 = por %p249, %p250
      %p252 = scmp.ne.s32.totalorder %s244, %s246
      %p253 = scmp.eq.s32.totalorder %s26, 1
      %p254 = por %p252, %p253
      %p255 = scmp.ne.s32.totalorder %s246, %s247
      %p256 = scmp.eq.s32.totalorder %s26, 0
      %p257 = por %p255, %p256
      %p258 = scmp.ne.s32.totalorder %s246, %s247
      %p259 = scmp.eq.s32.totalorder %s27, 1
      %p260 = por %p258, %p259
      %p262 = scmp.ne.s32.totalorder %s247, %s261
      %p263 = scmp.eq.s32.totalorder %s27, 0
      %p264 = por %p262, %p263
      %s266 = sadd.s32 %s265, 1
      %p269 = scmp.eq.s32.totalorder %s21, 1
      %p270 = scmp.ne.s32.totalorder %s265, %s267
      %p271 = scmp.eq.s32.totalorder %s21, 0
      %p272 = por %p270, %p271
      %p273 = scmp.ne.s32.totalorder %s265, %s267
      %p274 = scmp.eq.s32.totalorder %s26, 1
      %p275 = por %p273, %p274
      %p276 = scmp.ne.s32.totalorder %s267, %s268
      %p277 = scmp.eq.s32.totalorder %s26, 0
      %p278 = por %p276, %p277
      %p279 = scmp.ne.s32.totalorder %s267, %s268
      %p280 = scmp.eq.s32.totalorder %s27, 1
      %p281 = por %p279, %p280
      %p283 = scmp.ne.s32.totalorder %s268, %s282
      %p284 = scmp.eq.s32.totalorder %s27, 0
      %p285 = por %p283, %p284
      %s286 = ssub.s32 %s21, %s28
      %p287 = scmp.eq.s32.totalorder %s286, 0
      %s289 = sadd.s32 %s288, 1
      %s290 = scalar_select %p287, %s288, %s289
      %p293 = pneg %p287
      %p294 = scmp.eq.s32.totalorder %s21, 1
      %p295 = por %p293, %p294
      %p296 = scmp.ne.s32.totalorder %s288, %s291
      %p297 = scmp.eq.s32.totalorder %s21, 0
      %p298 = por %p296, %p297
      %p299 = scmp.ne.s32.totalorder %s288, %s291
      %p300 = scmp.eq.s32.totalorder %s26, 1
      %p301 = por %p299, %p300
      %p302 = scmp.ne.s32.totalorder %s291, %s292
      %p303 = scmp.eq.s32.totalorder %s26, 0
      %p304 = por %p302, %p303
      %p305 = scmp.ne.s32.totalorder %s291, %s292
      %p306 = scmp.eq.s32.totalorder %s27, 1
      %p307 = por %p305, %p306
      %p309 = scmp.ne.s32.totalorder %s292, %s308
      %p310 = scmp.eq.s32.totalorder %s27, 0
      %p311 = por %p309, %p310
      %p312 = scmp.le.s32.totalorder 1, %s21
      %p313 = scmp.lt.s32.totalorder %s21, 3
      %p314 = pnand %p312, %p313
      %p315 = pneg %p314
      // Predicated region
      $region9: #{tpu_custom_call.1} parent=5 // pred_check
        _
      $region10: #{tpu_custom_call.1} parent=5 // pred_check_branch
        %317 = sbr.rel (%p314) target = $region12
      $region11: #{tpu_custom_call.1} parent=5 // pred_region
        %s318 = ssub.s32 %s21, 1
        // Predicated region
        $region13: #{tpu_custom_call.1} parent=11 // pred_check
          %p319 = pneg %p68
        $region14: #{tpu_custom_call.1} parent=11 // pred_check_branch
          %321 = sbr.rel (%p319) target = $region16
        $region15: #{tpu_custom_call.1} parent=11 // pred_region
          _
        $region16: #{tpu_custom_call.1} parent=11 // pred_fallthru
          _
        // Predicated region
        $region17: #{tpu_custom_call.1} parent=11 // pred_check
          %p322 = pneg %p89
        $region18: #{tpu_custom_call.1} parent=11 // pred_check_branch
          %324 = sbr.rel (%p322) target = $region20
        $region19: #{tpu_custom_call.1} parent=11 // pred_region
          _
        $region20: #{tpu_custom_call.1} parent=11 // pred_fallthru
          _
        // Predicated region
        $region21: #{tpu_custom_call.1} parent=11 // pred_check
          %p325 = pneg %p110
        $region22: #{tpu_custom_call.1} parent=11 // pred_check_branch
          %327 = sbr.rel (%p325) target = $region24
        $region23: #{tpu_custom_call.1} parent=11 // pred_region
          _
        $region24: #{tpu_custom_call.1} parent=11 // pred_fallthru
          _
        // Predicated region
        $region25: #{tpu_custom_call.1} parent=11 // pred_check
          %p328 = pneg %p131
        $region26: #{tpu_custom_call.1} parent=11 // pred_check_branch
          %330 = sbr.rel (%p328) target = $region28
        $region27: #{tpu_custom_call.1} parent=11 // pred_region
          _
        $region28: #{tpu_custom_call.1} parent=11 // pred_fallthru
          _
        // Predicated region
        $region29: #{tpu_custom_call.1} parent=11 // pred_check
          %p331 = pneg %p152
        $region30: #{tpu_custom_call.1} parent=11 // pred_check_branch
          %333 = sbr.rel (%p331) target = $region32
        $region31: #{tpu_custom_call.1} parent=11 // pred_region
          _
        $region32: #{tpu_custom_call.1} parent=11 // pred_fallthru
          _
        // Predicated region
        $region33: #{tpu_custom_call.1} parent=11 // pred_check
          %p334 = pneg %p173
        $region34: #{tpu_custom_call.1} parent=11 // pred_check_branch
          %336 = sbr.rel (%p334) target = $region36
        $region35: #{tpu_custom_call.1} parent=11 // pred_region
          _
        $region36: #{tpu_custom_call.1} parent=11 // pred_fallthru
          _
        // Predicated region
        $region37: #{tpu_custom_call.1} parent=11 // pred_check
          %p337 = pneg %p194
        $region38: #{tpu_custom_call.1} parent=11 // pred_check_branch
          %339 = sbr.rel (%p337) target = $region40
        $region39: #{tpu_custom_call.1} parent=11 // pred_region
          _
        $region40: #{tpu_custom_call.1} parent=11 // pred_fallthru
          _
        // Predicated region
        $region41: #{tpu_custom_call.1} parent=11 // pred_check
          %p340 = pneg %p215
        $region42: #{tpu_custom_call.1} parent=11 // pred_check_branch
          %342 = sbr.rel (%p340) target = $region44
        $region43: #{tpu_custom_call.1} parent=11 // pred_region
          _
        $region44: #{tpu_custom_call.1} parent=11 // pred_fallthru
          _
        // Predicated region
        $region45: #{tpu_custom_call.1} parent=11 // pred_check
          %p343 = pneg %p236
        $region46: #{tpu_custom_call.1} parent=11 // pred_check_branch
          %345 = sbr.rel (%p343) target = $region48
        $region47: #{tpu_custom_call.1} parent=11 // pred_region
          _
        $region48: #{tpu_custom_call.1} parent=11 // pred_fallthru
          _
        // Predicated region
        $region49: #{tpu_custom_call.1} parent=11 // pred_check
          %p346 = pneg %p257
        $region50: #{tpu_custom_call.1} parent=11 // pred_check_branch
          %348 = sbr.rel (%p346) target = $region52
        $region51: #{tpu_custom_call.1} parent=11 // pred_region
          _
        $region52: #{tpu_custom_call.1} parent=11 // pred_fallthru
          _
        // Predicated region
        $region53: #{tpu_custom_call.1} parent=11 // pred_check
          %p349 = pneg %p278
        $region54: #{tpu_custom_call.1} parent=11 // pred_check_branch
          %351 = sbr.rel (%p349) target = $region56
        $region55: #{tpu_custom_call.1} parent=11 // pred_region
          _
        $region56: #{tpu_custom_call.1} parent=11 // pred_fallthru
          _
      $region12: #{tpu_custom_call.1} parent=5 // pred_fallthru
        _
      %p352 = scmp.lt.s32.totalorder %s21, 2
      // Predicated region
      $region57: #{tpu_custom_call.1} parent=5 // pred_check
        %p353 = pneg %p352
      $region58: #{tpu_custom_call.1} parent=5 // pred_check_branch
        %355 = sbr.rel (%p353) target = $region60
      $region59: #{tpu_custom_call.1} parent=5 // pred_region
        // Predicated region
        $region61: #{tpu_custom_call.1} parent=59 // pred_check
          %p356 = pneg %p41
        $region62: #{tpu_custom_call.1} parent=59 // pred_check_branch
          %358 = sbr.rel (%p356) target = $region64
        $region63: #{tpu_custom_call.1} parent=59 // pred_region
          %p359 = scmp.lt.s32.totalorder %s21, 1
          %s360 = scalar_select %p359, %s21, 1
          %s361 = smul.addr %s360, 8
          %s362 = scalar_lea.vmem %s0, %s361
        $region64: #{tpu_custom_call.1} parent=59 // pred_fallthru
          _
      $region60: #{tpu_custom_call.1} parent=5 // pred_fallthru
        _
      %p363 = scmp.le.s32.totalorder 1, %s21
      %p364 = scmp.lt.s32.totalorder %s21, 3
      %p365 = pnand %p363, %p364
      %p366 = pneg %p365
      // Predicated region
      $region65: #{tpu_custom_call.1} parent=5 // pred_check
        _
      $region66: #{tpu_custom_call.1} parent=5 // pred_check_branch
        %368 = sbr.rel (%p365) target = $region68
      $region67: #{tpu_custom_call.1} parent=5 // pred_region
        %s369 = ssub.s32 %s21, 1
        %p370 = scmp.lt.s32.totalorder %s26, 1
        %s371 = scalar_select %p370, %s26, 1
        %s372 = smul.addr %s371, 8
        %s373 = scalar_lea.vmem %s0, %s372
        %p374 = pneg %p47
        %p375 = pneg %p44
        %p376 = pneg %p68
        %p377 = pneg %p65
        %p378 = pneg %p89
        %p379 = pneg %p86
        %p380 = pneg %p110
        %p381 = pneg %p107
        %p382 = pneg %p131
        %p383 = pneg %p128
        %p384 = pneg %p152
        %p385 = pneg %p149
        %p386 = pneg %p173
        %p387 = pneg %p170
        %p388 = pneg %p194
        %p389 = pneg %p191
        %p390 = pneg %p215
        %p391 = pneg %p212
        %p392 = pneg %p236
        %p393 = pneg %p233
        %p394 = pneg %p257
        %p395 = pneg %p254
        %p396 = pneg %p278
        %p397 = pneg %p275
        %p398 = pneg %p304
        %p399 = pneg %p301
        %s400 = sand.u32 %s291, 1
        %s401 = scalar_lea.sflag [#allocation4], %s400
        %s402 = sand.u32 %s291, 1
        %s403 = smul.addr %s402, 8
        %s404 = scalar_lea.vmem [#allocation3], %s403
        %p405 = scmp.lt.s32.totalorder %s26, 1
        %s406 = scalar_select %p405, %s26, 1
        %s407 = smul.addr %s406, 8
        %s408 = scalar_lea.vmem %s0, %s407
        %v409 = vld [vmem:[%s408] sm:$0xff]
        %v410 = vld [vmem:[%s1] sm:$0x1]
        %v411 = vld [vmem:[%s2] sm:$0x1]
        %vm412 = vcmask 261120
        %v413 = vsel %vm412, %v409, 0.0
        %414 = vadd.xlane.f32.xlu0 %v413
        %v415 = vpop.xlane.xlu0 %414
        %v416 = vrcp.pop 32.0
        %v417 = vmul.f32 32.0, %v416
        %v418 = vsub.f32 1.0, %v417
        %v419 = vmul.f32 %v416, %v418
        %v420 = vadd.f32 %v416, %v419
        %vm421 = vweird.f32 %v416
        %v422 = vsel %vm421, %v416, %v420
        %v423 = vmul.f32 %v415, %v422
        %v424 = vsub.f32 %v409, %v423
        %v425 = vmul.f32 %v424, %v424
        %v426 = vsel %vm412, %v425, 0.0
        %427 = vadd.xlane.f32.xlu0 %v426
        %v428 = vpop.xlane.xlu0 %427
        %v429 = vmul.f32 %v428, %v422
        %v430 = vadd.f32 %v429, 1e-05
        %v431 = vrsqrt.pop %v430
        %v432 = vmul.f32 %v431, %v430
        %v433 = vmul.f32 %v432, %v431
        %v434 = vmul.f32 0.5, %v433
        %v435 = vsub.f32 1.5, %v434
        %v436 = vmul.f32 %v431, %v435
        %vm437 = vweird.f32 %v430
        %vm438 = vweird.f32 %v431
        %vm439 = vmor %vm437, %vm438
        %v440 = vsel %vm439, %v431, %v436
        %v441 = vmul.f32 %v424, %v440
        %v443 = vperm.slane %v410, 0
        %v445 = vmul.f32 %v441, %v443
        %v447 = vperm.slane %v411, 0
        %v449 = vadd.f32 %v445, %v447
        %v450 = vld [vmem:[%s3] sm:$0xff]
        %v451 = vld [vmem:[%s3 + $0x8] sm:$0xff]
        %v452 = vld [vmem:[%s3 + $0x10] sm:$0xff]
        %v453 = vld [vmem:[%s3 + $0x18] sm:$0xff]
        %v455 = vsel %vm412, %v449, 0
        %457 = vmatpush.msra.mxu0 0.0
        %458 = vmatpush.msra.mxu0 0.0
        %459 = vmatpush.msra.mxu0 0.0
        %460 = vmatpush.msra.mxu0 0.0
        %461 = vmatpush.msra.mxu0 0.0
        %462 = vmatpush.msra.mxu0 0.0
        %463 = vmatpush.msra.mxu0 0.0
        %464 = vmatpush.msra.mxu0 0.0
        %465 = vmatpush.msra.mxu0 0.0
        %466 = vmatpush.msra.mxu0 0.0
        %467 = vmatpush.msra.mxu0 0.0
        %468 = vmatpush.msra.mxu0 0.0
        %469 = vmatpush.msra.mxu0 %v453
        %470 = vmatpush.msra.mxu0 %v452
        %471 = vmatpush.msra.mxu0 %v451
        %472 = vmatpush.msra.mxu0 %v450
        %473 = vmatmul.f32.gmra.mxu0 %v455
        %v474 = vpop.f32.mrf.mxu0
        %v475 = vadd.f32 0.0, %v474
        %476 = vdwg.mxu0
        %v477 = vmul.f32 %v475, 0.35355338
        %v478 = vlaneseq
        %v479 = vshrl.u32 %v478, 7
        %v480 = vlaneseq
        %v481 = vand.u32 %v480, 127
        %vm482 = vcmp.gt.s32.totalorder %v481, %v479
        %484 = vrot.lane.b32.xlu0 %v475, 96
        %v485 = vpop.permute.xlu0 %484
        %vm486 = vcmask 64512
        %v488 = vsel %vm486, %v477, 0
        %v490 = vsel %vm486, %v485, 0
        %492 = vmatpush.xpose.msra.mxu0 0.0
        %493 = vmatpush.xpose.msra.mxu0 0.0
        %494 = vmatpush.xpose.msra.mxu0 0.0
        %495 = vmatpush.xpose.msra.mxu0 0.0
        %496 = vmatpush.xpose.msra.mxu0 0.0
        %497 = vmatpush.xpose.msra.mxu0 0.0
        %498 = vmatpush.xpose.msra.mxu0 0.0
        %499 = vmatpush.xpose.msra.mxu0 0.0
        %500 = vmatpush.xpose.msra.mxu0 0.0
        %501 = vmatpush.xpose.msra.mxu0 0.0
        %502 = vmatpush.xpose.msra.mxu0 0.0
        %503 = vmatpush.xpose.msra.mxu0 0.0
        %504 = vmatpush.xpose.msra.mxu0 0.0
        %505 = vmatpush.xpose.msra.mxu0 0.0
        %506 = vmatpush.xpose.msra.mxu0 0.0
        %507 = vmatpush.xpose.msra.mxu0 %v490
        %508 = vmatmul.f32.gmra.mxu0 %v488
        %v509 = vpop.f32.mrf.mxu0
        %v510 = vadd.f32 0.0, %v509
        %511 = vdwg.mxu0
        %v512 = vsel %vm482, -1e+30, %v510
        %v513 = vsel %vm486, %v512, -inf
        %514 = vmax.xlane.f32.xlu0 %v513
        %v515 = vpop.xlane.xlu0 %514
        %v516 = vsub.f32 %v512, %v515
        %v517 = vmul.f32 %v516, 1.442695
        %v518 = vpow.pop %v517
        %v519 = vsel %vm486, %v518, 0.0
        %520 = vadd.xlane.f32.xlu0 %v519
        %v521 = vpop.xlane.xlu0 %520
        %522 = vrot.lane.b32.xlu0 %v475, 64
        %v523 = vpop.permute.xlu0 %522
        %v526 = vsel %vm486, %v518, 0
        %528 = vmatpush.msra.mxu0 0.0
        %529 = vmatpush.msra.mxu0 0.0
        %530 = vmatpush.msra.mxu0 0.0
        %531 = vmatpush.msra.mxu0 0.0
        %532 = vmatpush.msra.mxu0 0.0
        %533 = vmatpush.msra.mxu0 0.0
        %534 = vmatpush.msra.mxu0 0.0
        %535 = vmatpush.msra.mxu0 0.0
        %536 = vmatpush.msra.mxu0 0.0
        %537 = vmatpush.msra.mxu0 0.0
        %538 = vmatpush.msra.mxu0 0.0
        %539 = vmatpush.msra.mxu0 0.0
        %540 = vmatpush.msra.mxu0 0.0
        %541 = vmatpush.msra.mxu0 0.0
        %542 = vmatpush.msra.mxu0 0.0
        %543 = vmatpush.msra.mxu0 %v523
        %544 = vmatmul.f32.gmra.mxu0 %v526
        %v545 = vpop.f32.mrf.mxu0
        %v546 = vadd.f32 0.0, %v545
        %547 = vdwg.mxu0
        %v548 = vrcp.pop %v521
        %v549 = vmul.f32 %v521, %v548
        %v550 = vsub.f32 1.0, %v549
        %v551 = vmul.f32 %v548, %v550
        %v552 = vadd.f32 %v548, %v551
        %vm553 = vweird.f32 %v521
        %vm554 = vweird.f32 %v548
        %vm555 = vmor %vm553, %vm554
        %v556 = vsel %vm555, %v548, %v552
        %v557 = vand.u32 2147483647, %v521
        %vm558 = vcmp.eq.f32.partialorder %v557, 8.507059e+37
        %v559 = vand.u32 %v521, 2147483648
        %v560 = vor.u32 1.1754944e-38, %v559
        %v561 = vsel %vm558, %v560, %v556
        %v562 = vmul.f32 1.0, %v561
        %v563 = vmul.f32 %v546, %v562
        %564 = vst.msk [vmem:[#allocation2] sm:$0xff] %vm486, %v563
        %565 = vrot.lane.b32.xlu0 %v477, 120
        %v566 = vpop.permute.xlu0 %565
        %567 = vrot.lane.b32.xlu0 %v475, 88
        %v568 = vpop.permute.xlu0 %567
        %v569 = vsel %vm486, %v566, 0
        %v571 = vsel %vm486, %v568, 0
        %573 = vmatpush.xpose.msra.mxu0 0.0
        %574 = vmatpush.xpose.msra.mxu0 0.0
        %575 = vmatpush.xpose.msra.mxu0 0.0
        %576 = vmatpush.xpose.msra.mxu0 0.0
        %577 = vmatpush.xpose.msra.mxu0 0.0
        %578 = vmatpush.xpose.msra.mxu0 0.0
        %579 = vmatpush.xpose.msra.mxu0 0.0
        %580 = vmatpush.xpose.msra.mxu0 0.0
        %581 = vmatpush.xpose.msra.mxu0 0.0
        %582 = vmatpush.xpose.msra.mxu0 0.0
        %583 = vmatpush.xpose.msra.mxu0 0.0
        %584 = vmatpush.xpose.msra.mxu0 0.0
        %585 = vmatpush.xpose.msra.mxu0 0.0
        %586 = vmatpush.xpose.msra.mxu0 0.0
        %587 = vmatpush.xpose.msra.mxu0 0.0
        %588 = vmatpush.xpose.msra.mxu0 %v571
        %589 = vmatmul.f32.gmra.mxu0 %v569
        %v590 = vpop.f32.mrf.mxu0
        %v591 = vadd.f32 0.0, %v590
        %592 = vdwg.mxu0
        %v593 = vsel %vm482, -1e+30, %v591
        %v594 = vsel %vm486, %v593, -inf
        %595 = vmax.xlane.f32.xlu0 %v594
        %v596 = vpop.xlane.xlu0 %595
        %v597 = vsub.f32 %v593, %v596
        %v598 = vmul.f32 %v597, 1.442695
        %v599 = vpow.pop %v598
        %v600 = vsel %vm486, %v599, 0.0
        %601 = vadd.xlane.f32.xlu0 %v600
        %v602 = vpop.xlane.xlu0 %601
        %603 = vrot.lane.b32.xlu0 %v475, 56
        %v604 = vpop.permute.xlu0 %603
        %v607 = vsel %vm486, %v599, 0
        %609 = vmatpush.msra.mxu0 0.0
        %610 = vmatpush.msra.mxu0 0.0
        %611 = vmatpush.msra.mxu0 0.0
        %612 = vmatpush.msra.mxu0 0.0
        %613 = vmatpush.msra.mxu0 0.0
        %614 = vmatpush.msra.mxu0 0.0
        %615 = vmatpush.msra.mxu0 0.0
        %616 = vmatpush.msra.mxu0 0.0
        %617 = vmatpush.msra.mxu0 0.0
        %618 = vmatpush.msra.mxu0 0.0
        %619 = vmatpush.msra.mxu0 0.0
        %620 = vmatpush.msra.mxu0 0.0
        %621 = vmatpush.msra.mxu0 0.0
        %622 = vmatpush.msra.mxu0 0.0
        %623 = vmatpush.msra.mxu0 0.0
        %624 = vmatpush.msra.mxu0 %v604
        %625 = vmatmul.f32.gmra.mxu0 %v607
        %v626 = vpop.f32.mrf.mxu0
        %v627 = vadd.f32 0.0, %v626
        %628 = vdwg.mxu0
        %v629 = vrcp.pop %v602
        %v630 = vmul.f32 %v602, %v629
        %v631 = vsub.f32 1.0, %v630
        %v632 = vmul.f32 %v629, %v631
        %v633 = vadd.f32 %v629, %v632
        %vm634 = vweird.f32 %v602
        %vm635 = vweird.f32 %v629
        %vm636 = vmor %vm634, %vm635
        %v637 = vsel %vm636, %v629, %v633
        %v638 = vand.u32 2147483647, %v602
        %vm639 = vcmp.eq.f32.partialorder %v638, 8.507059e+37
        %v640 = vand.u32 %v602, 2147483648
        %v641 = vor.u32 1.1754944e-38, %v640
        %v642 = vsel %vm639, %v641, %v637
        %v643 = vmul.f32 1.0, %v642
        %v644 = vmul.f32 %v627, %v643
        %646 = vrot.lane.b32.xlu0 %v644, 8
        %v647 = vpop.permute.xlu0 %646
        %vm649 = vcmask 130112
        %650 = vst.msk [vmem:[#allocation2] sm:$0xff] %vm649, %v647
        %651 = vrot.lane.b32.xlu0 %v477, 112
        %v652 = vpop.permute.xlu0 %651
        %653 = vrot.lane.b32.xlu0 %v475, 80
        %v654 = vpop.permute.xlu0 %653
        %v655 = vsel %vm486, %v652, 0
        %v657 = vsel %vm486, %v654, 0
        %659 = vmatpush.xpose.msra.mxu0 0.0
        %660 = vmatpush.xpose.msra.mxu0 0.0
        %661 = vmatpush.xpose.msra.mxu0 0.0
        %662 = vmatpush.xpose.msra.mxu0 0.0
        %663 = vmatpush.xpose.msra.mxu0 0.0
        %664 = vmatpush.xpose.msra.mxu0 0.0
        %665 = vmatpush.xpose.msra.mxu0 0.0
        %666 = vmatpush.xpose.msra.mxu0 0.0
        %667 = vmatpush.xpose.msra.mxu0 0.0
        %668 = vmatpush.xpose.msra.mxu0 0.0
        %669 = vmatpush.xpose.msra.mxu0 0.0
        %670 = vmatpush.xpose.msra.mxu0 0.0
        %671 = vmatpush.xpose.msra.mxu0 0.0
        %672 = vmatpush.xpose.msra.mxu0 0.0
        %673 = vmatpush.xpose.msra.mxu0 0.0
        %674 = vmatpush.xpose.msra.mxu0 %v657
        %675 = vmatmul.f32.gmra.mxu0 %v655
        %v676 = vpop.f32.mrf.mxu0
        %v677 = vadd.f32 0.0, %v676
        %678 = vdwg.mxu0
        %v679 = vsel %vm482, -1e+30, %v677
        %v680 = vsel %vm486, %v679, -inf
        %681 = vmax.xlane.f32.xlu0 %v680
        %v682 = vpop.xlane.xlu0 %681
        %v683 = vsub.f32 %v679, %v682
        %v684 = vmul.f32 %v683, 1.442695
        %v685 = vpow.pop %v684
        %v686 = vsel %vm486, %v685, 0.0
        %687 = vadd.xlane.f32.xlu0 %v686
        %v688 = vpop.xlane.xlu0 %687
        %689 = vrot.lane.b32.xlu0 %v475, 48
        %v690 = vpop.permute.xlu0 %689
        %v693 = vsel %vm486, %v685, 0
        %695 = vmatpush.msra.mxu0 0.0
        %696 = vmatpush.msra.mxu0 0.0
        %697 = vmatpush.msra.mxu0 0.0
        %698 = vmatpush.msra.mxu0 0.0
        %699 = vmatpush.msra.mxu0 0.0
        %700 = vmatpush.msra.mxu0 0.0
        %701 = vmatpush.msra.mxu0 0.0
        %702 = vmatpush.msra.mxu0 0.0
        %703 = vmatpush.msra.mxu0 0.0
        %704 = vmatpush.msra.mxu0 0.0
        %705 = vmatpush.msra.mxu0 0.0
        %706 = vmatpush.msra.mxu0 0.0
        %707 = vmatpush.msra.mxu0 0.0
        %708 = vmatpush.msra.mxu0 0.0
        %709 = vmatpush.msra.mxu0 0.0
        %710 = vmatpush.msra.mxu0 %v690
        %711 = vmatmul.f32.gmra.mxu0 %v693
        %v712 = vpop.f32.mrf.mxu0
        %v713 = vadd.f32 0.0, %v712
        %714 = vdwg.mxu0
        %v715 = vrcp.pop %v688
        %v716 = vmul.f32 %v688, %v715
        %v717 = vsub.f32 1.0, %v716
        %v718 = vmul.f32 %v715, %v717
        %v719 = vadd.f32 %v715, %v718
        %vm720 = vweird.f32 %v688
        %vm721 = vweird.f32 %v715
        %vm722 = vmor %vm720, %vm721
        %v723 = vsel %vm722, %v715, %v719
        %v724 = vand.u32 2147483647, %v688
        %vm725 = vcmp.eq.f32.partialorder %v724, 8.507059e+37
        %v726 = vand.u32 %v688, 2147483648
        %v727 = vor.u32 1.1754944e-38, %v726
        %v728 = vsel %vm725, %v727, %v723
        %v729 = vmul.f32 1.0, %v728
        %v730 = vmul.f32 %v713, %v729
        %732 = vrot.lane.b32.xlu0 %v730, 16
        %v733 = vpop.permute.xlu0 %732
        %vm735 = vcmask 195712
        %736 = vst.msk [vmem:[#allocation2] sm:$0xff] %vm735, %v733
        %737 = vrot.lane.b32.xlu0 %v477, 104
        %v738 = vpop.permute.xlu0 %737
        %739 = vrot.lane.b32.xlu0 %v475, 72
        %v740 = vpop.permute.xlu0 %739
        %v741 = vsel %vm486, %v738, 0
        %v743 = vsel %vm486, %v740, 0
        %745 = vmatpush.xpose.msra.mxu0 0.0
        %746 = vmatpush.xpose.msra.mxu0 0.0
        %747 = vmatpush.xpose.msra.mxu0 0.0
        %748 = vmatpush.xpose.msra.mxu0 0.0
        %749 = vmatpush.xpose.msra.mxu0 0.0
        %750 = vmatpush.xpose.msra.mxu0 0.0
        %751 = vmatpush.xpose.msra.mxu0 0.0
        %752 = vmatpush.xpose.msra.mxu0 0.0
        %753 = vmatpush.xpose.msra.mxu0 0.0
        %754 = vmatpush.xpose.msra.mxu0 0.0
        %755 = vmatpush.xpose.msra.mxu0 0.0
        %756 = vmatpush.xpose.msra.mxu0 0.0
        %757 = vmatpush.xpose.msra.mxu0 0.0
        %758 = vmatpush.xpose.msra.mxu0 0.0
        %759 = vmatpush.xpose.msra.mxu0 0.0
        %760 = vmatpush.xpose.msra.mxu0 %v743
        %761 = vmatmul.f32.gmra.mxu0 %v741
        %v762 = vpop.f32.mrf.mxu0
        %v763 = vadd.f32 0.0, %v762
        %764 = vdwg.mxu0
        %v765 = vsel %vm482, -1e+30, %v763
        %v766 = vsel %vm486, %v765, -inf
        %767 = vmax.xlane.f32.xlu0 %v766
        %v768 = vpop.xlane.xlu0 %767
        %v769 = vsub.f32 %v765, %v768
        %v770 = vmul.f32 %v769, 1.442695
        %v771 = vpow.pop %v770
        %v772 = vsel %vm486, %v771, 0.0
        %773 = vadd.xlane.f32.xlu0 %v772
        %v774 = vpop.xlane.xlu0 %773
        %775 = vrot.lane.b32.xlu0 %v475, 40
        %v776 = vpop.permute.xlu0 %775
        %v779 = vsel %vm486, %v771, 0
        %781 = vmatpush.msra.mxu0 0.0
        %782 = vmatpush.msra.mxu0 0.0
        %783 = vmatpush.msra.mxu0 0.0
        %784 = vmatpush.msra.mxu0 0.0
        %785 = vmatpush.msra.mxu0 0.0
        %786 = vmatpush.msra.mxu0 0.0
        %787 = vmatpush.msra.mxu0 0.0
        %788 = vmatpush.msra.mxu0 0.0
        %789 = vmatpush.msra.mxu0 0.0
        %790 = vmatpush.msra.mxu0 0.0
        %791 = vmatpush.msra.mxu0 0.0
        %792 = vmatpush.msra.mxu0 0.0
        %793 = vmatpush.msra.mxu0 0.0
        %794 = vmatpush.msra.mxu0 0.0
        %795 = vmatpush.msra.mxu0 0.0
        %796 = vmatpush.msra.mxu0 %v776
        %797 = vmatmul.f32.gmra.mxu0 %v779
        %v798 = vpop.f32.mrf.mxu0
        %v799 = vadd.f32 0.0, %v798
        %800 = vdwg.mxu0
        %v801 = vrcp.pop %v774
        %v802 = vmul.f32 %v774, %v801
        %v803 = vsub.f32 1.0, %v802
        %v804 = vmul.f32 %v801, %v803
        %v805 = vadd.f32 %v801, %v804
        %vm806 = vweird.f32 %v774
        %vm807 = vweird.f32 %v801
        %vm808 = vmor %vm806, %vm807
        %v809 = vsel %vm808, %v801, %v805
        %v810 = vand.u32 2147483647, %v774
        %vm811 = vcmp.eq.f32.partialorder %v810, 8.507059e+37
        %v812 = vand.u32 %v774, 2147483648
        %v813 = vor.u32 1.1754944e-38, %v812
        %v814 = vsel %vm811, %v813, %v809
        %v815 = vmul.f32 1.0, %v814
        %v816 = vmul.f32 %v799, %v815
        %818 = vrot.lane.b32.xlu0 %v816, 24
        %v819 = vpop.permute.xlu0 %818
        %vm821 = vcmask 261312
        %822 = vst.msk [vmem:[#allocation2] sm:$0xff] %vm821, %v819
        %v823 = vld [vmem:[#allocation2] sm:$0xff]
        %v824 = vld [vmem:[%s4] sm:$0xff]
        %v825 = vld [vmem:[%s4 + $0x8] sm:$0xff]
        %v826 = vld [vmem:[%s4 + $0x10] sm:$0xff]
        %v827 = vld [vmem:[%s4 + $0x18] sm:$0xff]
        %v828 = vld [vmem:[%s5] sm:$0x1]
        %v830 = vperm.slane %v828, 0
        %v833 = vsel %vm412, %v823, 0
        %835 = vmatpush.msra.mxu0 0.0
        %836 = vmatpush.msra.mxu0 0.0
        %837 = vmatpush.msra.mxu0 0.0
        %838 = vmatpush.msra.mxu0 0.0
        %839 = vmatpush.msra.mxu0 0.0
        %840 = vmatpush.msra.mxu0 0.0
        %841 = vmatpush.msra.mxu0 0.0
        %842 = vmatpush.msra.mxu0 0.0
        %843 = vmatpush.msra.mxu0 0.0
        %844 = vmatpush.msra.mxu0 0.0
        %845 = vmatpush.msra.mxu0 0.0
        %846 = vmatpush.msra.mxu0 0.0
        %847 = vmatpush.msra.mxu0 %v827
        %848 = vmatpush.msra.mxu0 %v826
        %849 = vmatpush.msra.mxu0 %v825
        %850 = vmatpush.msra.mxu0 %v824
        %851 = vmatmul.f32.gmra.mxu0 %v833
        %v852 = vpop.f32.mrf.mxu0
        %v853 = vadd.f32 %v830, %v852
        %854 = vdwg.mxu0
        %v855 = vadd.f32 %v409, %v853
        %v856 = vld [vmem:[%s6] sm:$0x1]
        %v857 = vld [vmem:[%s7] sm:$0x1]
        %v858 = vsel %vm412, %v855, 0.0
        %859 = vadd.xlane.f32.xlu0 %v858
        %v860 = vpop.xlane.xlu0 %859
        %v861 = vmul.f32 %v860, %v422
        %v862 = vsub.f32 %v855, %v861
        %v863 = vmul.f32 %v862, %v862
        %v864 = vsel %vm412, %v863, 0.0
        %865 = vadd.xlane.f32.xlu0 %v864
        %v866 = vpop.xlane.xlu0 %865
        %v867 = vmul.f32 %v866, %v422
        %v868 = vadd.f32 %v867, 1e-05
        %v869 = vrsqrt.pop %v868
        %v870 = vmul.f32 %v869, %v868
        %v871 = vmul.f32 %v870, %v869
        %v872 = vmul.f32 0.5, %v871
        %v873 = vsub.f32 1.5, %v872
        %v874 = vmul.f32 %v869, %v873
        %vm875 = vweird.f32 %v868
        %vm876 = vweird.f32 %v869
        %vm877 = vmor %vm875, %vm876
        %v878 = vsel %vm877, %v869, %v874
        %v879 = vmul.f32 %v862, %v878
        %v881 = vperm.slane %v856, 0
        %v883 = vmul.f32 %v879, %v881
        %v885 = vperm.slane %v857, 0
        %v887 = vadd.f32 %v883, %v885
        %v888 = vld [vmem:[%s8] sm:$0xff]
        %v889 = vld [vmem:[%s8 + $0x8] sm:$0xff]
        %v890 = vld [vmem:[%s8 + $0x10] sm:$0xff]
        %v891 = vld [vmem:[%s8 + $0x18] sm:$0xff]
        %v892 = vld [vmem:[%s9] sm:$0x1]
        %v894 = vperm.slane %v892, 0
        %v897 = vsel %vm412, %v887, 0
        %899 = vmatpush.msra.mxu0 0.0
        %900 = vmatpush.msra.mxu0 0.0
        %901 = vmatpush.msra.mxu0 0.0
        %902 = vmatpush.msra.mxu0 0.0
        %903 = vmatpush.msra.mxu0 0.0
        %904 = vmatpush.msra.mxu0 0.0
        %905 = vmatpush.msra.mxu0 0.0
        %906 = vmatpush.msra.mxu0 0.0
        %907 = vmatpush.msra.mxu0 0.0
        %908 = vmatpush.msra.mxu0 0.0
        %909 = vmatpush.msra.mxu0 0.0
        %910 = vmatpush.msra.mxu0 0.0
        %911 = vmatpush.msra.mxu0 %v891
        %912 = vmatpush.msra.mxu0 %v890
        %913 = vmatpush.msra.mxu0 %v889
        %914 = vmatpush.msra.mxu0 %v888
        %915 = vmatmul.f32.gmra.mxu0 %v897
        %v916 = vpop.f32.mrf.mxu0
        %v917 = vadd.f32 %v894, %v916
        %918 = vdwg.mxu0
        %v919 = vmax.f32 %v917, 0.0
        %v920 = vld [vmem:[%s10] sm:$0xff]
        %v921 = vld [vmem:[%s10 + $0x8] sm:$0xff]
        %v922 = vld [vmem:[%s10 + $0x10] sm:$0xff]
        %v923 = vld [vmem:[%s10 + $0x18] sm:$0xff]
        %v924 = vld [vmem:[%s10 + $0x20] sm:$0xff]
        %v925 = vld [vmem:[%s10 + $0x28] sm:$0xff]
        %v926 = vld [vmem:[%s10 + $0x30] sm:$0xff]
        %v927 = vld [vmem:[%s10 + $0x38] sm:$0xff]
        %v928 = vld [vmem:[%s10 + $0x40] sm:$0xff]
        %v929 = vld [vmem:[%s10 + $0x48] sm:$0xff]
        %v930 = vld [vmem:[%s10 + $0x50] sm:$0xff]
        %v931 = vld [vmem:[%s10 + $0x58] sm:$0xff]
        %v932 = vld [vmem:[%s10 + $0x60] sm:$0xff]
        %v933 = vld [vmem:[%s10 + $0x68] sm:$0xff]
        %v934 = vld [vmem:[%s10 + $0x70] sm:$0xff]
        %v935 = vld [vmem:[%s10 + $0x78] sm:$0xff]
        %v936 = vld [vmem:[%s11] sm:$0x1]
        %v938 = vperm.slane %v936, 0
        %940 = vmatpush.msra.mxu0 %v935
        %941 = vmatpush.msra.mxu0 %v934
        %942 = vmatpush.msra.mxu0 %v933
        %943 = vmatpush.msra.mxu0 %v932
        %944 = vmatpush.msra.mxu0 %v931
        %945 = vmatpush.msra.mxu0 %v930
        %946 = vmatpush.msra.mxu0 %v929
        %947 = vmatpush.msra.mxu0 %v928
        %948 = vmatpush.msra.mxu0 %v927
        %949 = vmatpush.msra.mxu0 %v926
        %950 = vmatpush.msra.mxu0 %v925
        %951 = vmatpush.msra.mxu0 %v924
        %952 = vmatpush.msra.mxu0 %v923
        %953 = vmatpush.msra.mxu0 %v922
        %954 = vmatpush.msra.mxu0 %v921
        %955 = vmatpush.msra.mxu0 %v920
        %956 = vmatmul.f32.gmra.mxu0 %v919
        %v957 = vpop.f32.mrf.mxu0
        %v958 = vadd.f32 %v938, %v957
        %959 = vdwg.mxu0
        %v960 = vadd.f32 %v855, %v958
        %961 = vst.msk [vmem:[%s404] sm:$0xff] %vm412, %v960
        %s962 = sand.u32 %s291, 1
        %s963 = scalar_lea.sflag [#allocation4], %s962
        %s964 = sand.u32 %s291, 1
        %s965 = smul.addr %s964, 8
        %s966 = scalar_lea.vmem [#allocation3], %s965
        // Predicated region
        $region69: #{tpu_custom_call.1} parent=67 // pred_check
          %p967 = pneg %p301
        $region70: #{tpu_custom_call.1} parent=67 // pred_check_branch
          %969 = sbr.rel (%p967) target = $region72
        $region71: #{tpu_custom_call.1} parent=67 // pred_region
          %971 = vsyncadd %s963, 0
          %s972 = smul.addr %s26, 8
          %s973 = scalar_lea.hbm %s12, %s972
          %s975 = sshll.u32 %s966, 4
          %s976 = int_to_ptr.vmem [resolvable:$true] %s975
          %s977 = sshll.u32 %s973, 4
          %s978 = int_to_ptr.hbm [resolvable:$true] %s977
          %980 = dma.vmem_to_hbm [thread:$0]  %s976, 128, %s978, %s963
        $region72: #{tpu_custom_call.1} parent=67 // pred_fallthru
          _
      $region68: #{tpu_custom_call.1} parent=5 // pred_fallthru
        _
      %p981 = scmp.le.s32.totalorder 2, %s21
      // Predicated region
      $region73: #{tpu_custom_call.1} parent=5 // pred_check
        %p982 = pneg %p981
      $region74: #{tpu_custom_call.1} parent=5 // pred_check_branch
        %984 = sbr.rel (%p982) target = $region76
      $region75: #{tpu_custom_call.1} parent=5 // pred_region
        %s985 = ssub.s32 %s21, 2
        // Predicated region
        $region77: #{tpu_custom_call.1} parent=75 // pred_check
          %p986 = pneg %p307
        $region78: #{tpu_custom_call.1} parent=75 // pred_check_branch
          %988 = sbr.rel (%p986) target = $region80
        $region79: #{tpu_custom_call.1} parent=75 // pred_region
          %s989 = sand.u32 %s292, 1
          %s990 = scalar_lea.sflag [#allocation4], %s989
          %s991 = sand.u32 %s292, 1
          %s992 = smul.addr %s991, 8
          %s993 = scalar_lea.vmem [#allocation3], %s992
          %995 = dma.done %s990, 128
        $region80: #{tpu_custom_call.1} parent=75 // pred_fallthru
          _
      $region76: #{tpu_custom_call.1} parent=5 // pred_fallthru
        _
    $region6: #{tpu_custom_call.1} parent=1 // loop_footer
      %s25 = sadd.s32 1, %s21
    $region7: #{tpu_custom_call.1} parent=1 // loop_footer_branch
      %20 = sbr.rel target = $region3
    $region8: #{tpu_custom_call.1} parent=1 // loop_exit
      _
    %996 = vsyncpa [#allocation4], 1
    %s997 = scalar_lea.sflag [#allocation4], 1
    %998 = vsyncpa %s997, 1

</llo_original>
